<compile_context>
chip_gen: v7x
topology: tpu7x:2x2x1
jax: 0.10.0
libtpu: 0.0.40
codegen_flags: <defaults>
</compile_context>

<pallas_src>
import math
import numpy as np
import jax
import jax.numpy as jnp
from jax import lax
from jax.experimental import pallas as pl
from jax.experimental.pallas import tpu as pltpu


# --------------------------- tiling / layout helpers ------------------------ #

_MAX_TILE_ROWS = 8192                   # cap on row tile (sublane dim)
_TILE_BUDGET_BYTES = 24 * 1024 * 1024   # dbl-buffered streams + f32 temporaries
_VMEM_LIMIT_BYTES = 32 * 1024 * 1024    # scoped-VMEM limit safe on v5e/v6e/v7x
_MAX_DENSE_LANES = 4096                 # widest lane-dense view we will build
_SMALL_INPUT_BYTES = 1 << 20            # below this, plain XLA beats a pallas_call


def _dense_lanes(S):
    """Lane width L = lcm(S, 128) for the lane-dense view, or None to keep (B, S)."""
    if S % 128 == 0:
        return None                     # minor dim already lane dense
    L = S * 128 // math.gcd(S, 128)
    return L if L <= _MAX_DENSE_LANES else None


def _layout(B, S):
    """(rows, lanes, reps): lane-dense (B*S/L, L) view if it tiles exactly, else (B, S, 1)."""
    L = _dense_lanes(S)
    if L is not None and (B * S) % L == 0:
        return (B * S) // L, L, L // S
    # TODO(synk): could pad B*S up to a multiple of L for ragged batches; padding
    # copies the whole (mem-bound) input, so the (B, S) fallback is kept instead.
    return B, S, 1


def _batch_tile(rows, lanes, n_streams, itemsize):
    """8-aligned row tile.  Budget counts double-buffered input streams plus f32
    compute temporaries so the chosen tile stays inside v7x's 32 MiB scoped VMEM."""
    if rows <= 8:
        return rows                     # full extent (always a legal block)
    per_row = n_streams * lanes * (2 * itemsize + 8)
    tb = max(8, _TILE_BUDGET_BYTES // per_row)
    tb = min(tb, _MAX_TILE_ROWS, rows)
    if tb >= rows and rows >= 16:
        # keep grid >= 2 so both v7x TensorCores get tiles (HBM BW is per-TC),
        # and so the HBM<->VMEM pipeline actually overlaps.
        tb = ((rows + 1) // 2 + 7) // 8 * 8
        tb = min(tb, rows)
    return max(8, (tb // 8) * 8)


def _pick_tile(rows, lanes, n_streams, itemsize, tile_rows):
    if tile_rows is None:
        return _batch_tile(rows, lanes, n_streams, itemsize)
    if rows <= 8:
        return rows
    return max(8, (min(tile_rows, rows) // 8) * 8)


def _compiler_params():
    # TODO(synk): sweep pipeline_mode=pl.Buffered(3) on the input specs for v7x.
    return pltpu.CompilerParams(
        dimension_semantics=("parallel",),      # independent row tiles -> megacore
        vmem_limit_bytes=_VMEM_LIMIT_BYTES,
    )


def _row_mask(TB, rows):
    """(TB, 1) mask of valid rows for the current grid step (tail tile only)."""
    r = pl.program_id(0) * TB + lax.broadcasted_iota(jnp.int32, (TB, 1), 0)
    return r < rows


# ----------------------------- Pallas kernels ------------------------------ #

def _make_wse_kernel(rows, TB, need_mask):
    """Per-tile, per-lane partial sums of (pred - target)^2 * w (w broadcast over rows)."""
    def kernel(pred_ref, tgt_ref, w_ref, out_ref):
        p = pred_ref[...].astype(jnp.float32)   # cast in-kernel (bf16 streams 2 B/elem)
        t = tgt_ref[...].astype(jnp.float32)
        d = p - t
        se = d * d * w_ref[...].astype(jnp.float32)          # (TB, L) * (1, L)
        if need_mask:
            se = jnp.where(_row_mask(TB, rows), se, 0.0)     # select, not multiply
        out_ref[0, 0, :] = jnp.sum(se, axis=0)               # sublane reduce only
    return kernel


def _make_fused_enc_final_kernel(rows, TB, need_mask):
    """enc weighted SE + final weighted SE (lambda pre-folded into wf) per tile."""
    def kernel(enc_ref, fin_ref, tgt_ref, we_ref, wf_ref, out_ref):
        t = tgt_ref[...].astype(jnp.float32)
        de = enc_ref[...].astype(jnp.float32) - t
        df = fin_ref[...].astype(jnp.float32) - t
        comb = (de * de * we_ref[...].astype(jnp.float32)
                + df * df * wf_ref[...].astype(jnp.float32))
        if need_mask:
            comb = jnp.where(_row_mask(TB, rows), comb, 0.0)
        out_ref[0, 0, :] = jnp.sum(comb, axis=0)
    return kernel


def _make_enc_smooth_kernel(rows, TB, lanes, period, need_mask):
    """enc weighted SE partials + Conv1d([-1,1],bias=1)^2 smoothness partials.

    Works on both the (B, S) layout (lanes == period == S) and the lane-dense
    (rows, L) layout (period == S, L a multiple of S): the one-lane shift gives
    p[:, j+1] - p[:, j]; lanes with (j % S == S-1) are sequence boundaries and
    are zeroed, which also kills the wrap-around lane.  Both partial outputs are
    full lane width (unmasked stores).
    """
    def kernel(enc_ref, tgt_ref, we_ref, out_pred_ref, out_sm_ref):
        p = enc_ref[...].astype(jnp.float32)
        t = tgt_ref[...].astype(jnp.float32)
        d = p - t
        se = d * d * we_ref[...].astype(jnp.float32)
        # one-lane left shift.
        # TODO(synk): pltpu.roll would run on the otherwise-idle XLU slot;
        # slice+concat kept for maximum portability (kernel is HBM-bound anyway).
        nxt = jnp.concatenate([p[:, 1:], p[:, :1]], axis=-1)
        sd = nxt - p + 1.0
        sq = sd * sd
        lane = lax.broadcasted_iota(jnp.int32, (TB, lanes), 1)
        sq = jnp.where(lane % period == period - 1, 0.0, sq)
        if need_mask:
            m = _row_mask(TB, rows)
            se = jnp.where(m, se, 0.0)
            sq = jnp.where(m, sq, 0.0)
        out_pred_ref[0, 0, :] = jnp.sum(se, axis=0)
        out_sm_ref[0, 0, :] = jnp.sum(sq, axis=0)
    return kernel


# ------------------------------ loss wrappers ------------------------------ #

def _weighted_se_sum(pred, target, w, tile_rows=None):
    B, S = pred.shape
    rows, lanes, reps = _layout(B, S)
    w = w.astype(jnp.float32)
    if reps > 1:
        # row-major reshape == bitcast view; no relayout copy for default layouts.
        pred = pred.reshape(rows, lanes)
        target = target.reshape(rows, lanes)
        w = jnp.tile(w, (1, reps))
    itemsize = max(pred.dtype.itemsize, target.dtype.itemsize)
    TB = _pick_tile(rows, lanes, 2, itemsize, tile_rows)
    grid = pl.cdiv(rows, TB)
    need_mask = (rows % TB) != 0
    partials = pl.pallas_call(
        _make_wse_kernel(rows, TB, need_mask),
        grid=(grid,),
        in_specs=[
            pl.BlockSpec((TB, lanes), lambda i: (i, 0)),
            pl.BlockSpec((TB, lanes), lambda i: (i, 0)),
            pl.BlockSpec((1, lanes), lambda i: (0, 0)),       # weights stay resident
        ],
        out_specs=pl.BlockSpec((1, 1, lanes), lambda i: (i, 0, 0)),
        out_shape=jax.ShapeDtypeStruct((grid, 1, lanes), jnp.float32),
        compiler_params=_compiler_params(),
    )(pred, target, w)
    return jnp.sum(partials)


def weighted_mse_loss(pred, target, w, tile_rows=None):
    B, S = pred.shape
    return _weighted_se_sum(pred, target, w, tile_rows) / jnp.float32(B * S)


def mse_loss(pred, target, tile_rows=None):
    B, S = pred.shape
    return _weighted_se_sum(pred, target, jnp.ones((1, S), jnp.float32),
                            tile_rows) / jnp.float32(B * S)


def fused_enc_final_loss(enc_pred, final_pred, batch_y, w_enc, w_fin, lam,
                         tile_rows=None):
    """enc_criterion(enc, y) + lam * final_criterion(final, y) in one pallas_call."""
    B, S = enc_pred.shape
    rows, lanes, reps = _layout(B, S)
    w_enc = w_enc.astype(jnp.float32)
    # fold lambda_final_pred into the final weights on the host (also avoids
    # closing over a jnp scalar inside the kernel).
    w_fin = w_fin.astype(jnp.float32) * jnp.float32(lam)
    if reps > 1:
        enc_pred = enc_pred.reshape(rows, lanes)
        final_pred = final_pred.reshape(rows, lanes)
        batch_y = batch_y.reshape(rows, lanes)
        w_enc = jnp.tile(w_enc, (1, reps))
        w_fin = jnp.tile(w_fin, (1, reps))
    itemsize = max(enc_pred.dtype.itemsize, final_pred.dtype.itemsize,
                   batch_y.dtype.itemsize)
    TB = _pick_tile(rows, lanes, 3, itemsize, tile_rows)
    grid = pl.cdiv(rows, TB)
    need_mask = (rows % TB) != 0
    partials = pl.pallas_call(
        _make_fused_enc_final_kernel(rows, TB, need_mask),
        grid=(grid,),
        in_specs=[
            pl.BlockSpec((TB, lanes), lambda i: (i, 0)),
            pl.BlockSpec((TB, lanes), lambda i: (i, 0)),
            pl.BlockSpec((TB, lanes), lambda i: (i, 0)),
            pl.BlockSpec((1, lanes), lambda i: (0, 0)),
            pl.BlockSpec((1, lanes), lambda i: (0, 0)),
        ],
        out_specs=pl.BlockSpec((1, 1, lanes), lambda i: (i, 0, 0)),
        out_shape=jax.ShapeDtypeStruct((grid, 1, lanes), jnp.float32),
        compiler_params=_compiler_params(),
    )(enc_pred, final_pred, batch_y, w_enc, w_fin)
    return jnp.sum(partials) / jnp.float32(B * S)


def fused_enc_smooth_loss(enc_pred, batch_y, w_enc, tile_rows=None):
    """enc_criterion(enc, y) + MSE_Smoothness_Loss(enc) in one pallas_call."""
    B, S = enc_pred.shape
    rows, lanes, reps = _layout(B, S)
    w_enc = w_enc.astype(jnp.float32)
    if reps > 1:
        enc_pred = enc_pred.reshape(rows, lanes)
        batch_y = batch_y.reshape(rows, lanes)
        w_enc = jnp.tile(w_enc, (1, reps))
    itemsize = max(enc_pred.dtype.itemsize, batch_y.dtype.itemsize)
    TB = _pick_tile(rows, lanes, 2, itemsize, tile_rows)
    grid = pl.cdiv(rows, TB)
    need_mask = (rows % TB) != 0
    pred_p, sm_p = pl.pallas_call(
        _make_enc_smooth_kernel(rows, TB, lanes, S, need_mask),
        grid=(grid,),
        in_specs=[
            pl.BlockSpec((TB, lanes), lambda i: (i, 0)),
            pl.BlockSpec((TB, lanes), lambda i: (i, 0)),
            pl.BlockSpec((1, lanes), lambda i: (0, 0)),
        ],
        out_specs=(
            pl.BlockSpec((1, 1, lanes), lambda i: (i, 0, 0)),
            pl.BlockSpec((1, 1, lanes), lambda i: (i, 0, 0)),
        ),
        out_shape=(
            jax.ShapeDtypeStruct((grid, 1, lanes), jnp.float32),
            jax.ShapeDtypeStruct((grid, 1, lanes), jnp.float32),
        ),
        compiler_params=_compiler_params(),
    )(enc_pred, batch_y, w_enc)
    return (jnp.sum(pred_p) / jnp.float32(B * S)
            + jnp.sum(sm_p) / jnp.float32(B * (S - 1)))


# ------------------------- small-input XLA fast path ------------------------ #

def _xla_weighted_mse(pred, target, w):
    d = pred.astype(jnp.float32) - target.astype(jnp.float32)
    return jnp.mean(d * d * w)


def _xla_smooth(pred):
    p = pred.astype(jnp.float32)
    sd = p[:, 1:] - p[:, :-1] + 1.0
    return jnp.mean(sd * sd)


# ------------------------------- weights / loss ----------------------------- #

def _make_weights(seq_length, weight_type, sigma_faktor, anteil):
    if weight_type == 'gaussian':
        sigma = seq_length / sigma_faktor
        x = np.linspace(1, seq_length, seq_length)
        mu = float(seq_length)
        y = np.exp(-0.5 * ((x - mu) / sigma) ** 2) / (sigma * np.sqrt(2.0 * np.pi))
        y = y + np.max(y) / anteil
        y = y / np.sum(y) * seq_length
    elif weight_type == 'last':
        y = np.zeros(seq_length)
        y[-1] = seq_length
    else:
        raise ValueError(f'{weight_type} is not implemented')
    # NOTE: PyTorch builds these in float64; TPU uses float32.
    return jnp.asarray(y.reshape(1, seq_length), dtype=jnp.float32)


class HTSLoss:
    """JAX/Pallas port of models/Loss.py::HTSLoss (forward semantics only)."""

    def __init__(self, enc_pred_loss='MSE', final_pred_loss='WeightMSE',
                 seq_length=40, weight_type='gaussian', sigma_faktor=10, anteil=15,
                 smooth_loss=None, d_layers=2, lambda_final_pred=2,
                 lambda_final_smooth=1, include_enc_loss=False,
                 min_pallas_bytes=_SMALL_INPUT_BYTES):
        self.d_layers = d_layers
        self.include_enc_loss = include_enc_loss
        self.enc_pred_loss = enc_pred_loss
        self.final_pred_loss = final_pred_loss
        self.smooth_loss = smooth_loss
        self.lambda_final_pred = lambda_final_pred
        self.lambda_final_smooth = lambda_final_smooth
        self.seq_length = seq_length
        self.min_pallas_bytes = min_pallas_bytes

        gauss_w = _make_weights(seq_length, weight_type, sigma_faktor, anteil)
        ones_w = jnp.ones((1, seq_length), jnp.float32)

        if enc_pred_loss == 'WeightMSE':
            self.w_enc = gauss_w
        elif enc_pred_loss == 'MSE':
            self.w_enc = ones_w
        else:
            # TODO(synk): CrossEntropy enc loss not ported (not used by default config).
            raise NotImplementedError(enc_pred_loss)

        self.w_fin = None
        if self.d_layers > 0:
            if final_pred_loss == 'WeightMSE':
                self.w_fin = gauss_w
            elif final_pred_loss == 'MSE':
                self.w_fin = ones_w
            elif final_pred_loss is None:
                self.w_fin = None
            else:
                raise NotImplementedError(final_pred_loss)
            # Mirrors the original: final_smooth_criterion is always None.

    def _small(self, batch_y, n_streams):
        return (batch_y.size * batch_y.dtype.itemsize * n_streams
                < self.min_pallas_bytes)

    def __call__(self, outputs, batch_y):
        if self.d_layers == 0:
            enc_pred = outputs[0]
            if self._small(batch_y, 2):
                loss = _xla_weighted_mse(enc_pred, batch_y, self.w_enc)
                if self.smooth_loss is not None:
                    loss = loss + _xla_smooth(enc_pred)
                return loss
            if self.smooth_loss is not None:
                # one fused kernel: enc_pred streamed from HBM once
                return fused_enc_smooth_loss(enc_pred, batch_y, self.w_enc)
            return weighted_mse_loss(enc_pred, batch_y, self.w_enc)
        elif self.include_enc_loss:
            enc_pred, final_pred = outputs[0], outputs[1]
            if self._small(batch_y, 3):
                return (_xla_weighted_mse(enc_pred, batch_y, self.w_enc)
                        + self.lambda_final_pred
                        * _xla_weighted_mse(final_pred, batch_y, self.w_fin))
            # one fused kernel: batch_y streamed from HBM once
            # (final_smooth_criterion is always None in the reference module)
            return fused_enc_final_loss(enc_pred, final_pred, batch_y,
                                        self.w_enc, self.w_fin,
                                        self.lambda_final_pred)
        else:
            final_pred = outputs[1]
            if self._small(batch_y, 2):
                return _xla_weighted_mse(final_pred, batch_y, self.w_fin)
            return weighted_mse_loss(final_pred, batch_y, self.w_fin)


# ---------------------------------- main ----------------------------------- #

if __name__ == "__main__":
    # --- small shapes through HTSLoss (forced onto the Pallas kernels) ---
    B, S = 4, 8
    k1, k2, k3 = jax.random.split(jax.random.PRNGKey(0), 3)
    enc_pred = jax.random.normal(k1, (B, S), dtype=jnp.float32)
    final_pred = jax.random.normal(k2, (B, S), dtype=jnp.float32)
    batch_y = jax.random.normal(k3, (B, S), dtype=jnp.float32)
    w_ref = _make_weights(S, 'gaussian', 10, 15)

    # 1) default config: WeightMSE on outputs[1]
    loss_fn = HTSLoss(seq_length=S, min_pallas_bytes=0)
    loss = jax.block_until_ready(loss_fn((enc_pred, final_pred), batch_y))
    ref = jnp.mean((final_pred - batch_y) ** 2 * w_ref)
    assert jnp.allclose(loss, ref, rtol=1e-5, atol=1e-5), (loss, ref)

    # 2) include_enc_loss path -> single fused kernel (lambda folded into weights)
    loss_fn2 = HTSLoss(seq_length=S, include_enc_loss=True, min_pallas_bytes=0)
    l2 = jax.block_until_ready(loss_fn2((enc_pred, final_pred), batch_y))
    ref2 = jnp.mean((enc_pred - batch_y) ** 2) + 2.0 * ref
    assert jnp.allclose(l2, ref2, rtol=1e-5, atol=1e-5), (l2, ref2)

    # 3) d_layers==0 + smoothness path -> single fused kernel
    loss_fn3 = HTSLoss(seq_length=S, d_layers=0, smooth_loss='smooth_mse',
                       min_pallas_bytes=0)
    l3 = jax.block_until_ready(loss_fn3((enc_pred, final_pred), batch_y))
    ref3 = jnp.mean((enc_pred - batch_y) ** 2) + jnp.mean(
        (enc_pred[:, 1:] - enc_pred[:, :-1] + 1.0) ** 2)
    assert jnp.allclose(l3, ref3, rtol=1e-5, atol=1e-5), (l3, ref3)

    # 3b) small-input XLA fast path (default threshold) agrees with the kernel
    l_fast = jax.block_until_ready(
        HTSLoss(seq_length=S)((enc_pred, final_pred), batch_y))
    assert jnp.allclose(l_fast, loss, rtol=1e-5, atol=1e-5), (l_fast, loss)

    # 4) lane-dense view (S=40 -> 640 lanes), grid > 1 + masked tail rows
    Bd, Sd = 144, 40
    kd1, kd2, kd3 = jax.random.split(jax.random.PRNGKey(1), 3)
    pd = jax.random.normal(kd1, (Bd, Sd), dtype=jnp.float32)
    td = jax.random.normal(kd2, (Bd, Sd), dtype=jnp.float32)
    ed = jax.random.normal(kd3, (Bd, Sd), dtype=jnp.float32)
    wd = _make_weights(Sd, 'gaussian', 10, 15)
    g4 = jax.block_until_ready(weighted_mse_loss(pd, td, wd))
    r4 = jnp.mean((pd - td) ** 2 * wd)
    assert jnp.allclose(g4, r4, rtol=1e-5, atol=1e-5), (g4, r4)
    ones_d = jnp.ones((1, Sd), jnp.float32)
    g5 = jax.block_until_ready(fused_enc_final_loss(ed, pd, td, ones_d, wd, 2.0))
    r5 = jnp.mean((ed - td) ** 2) + 2.0 * r4
    assert jnp.allclose(g5, r5, rtol=1e-5, atol=1e-5), (g5, r5)
    g6 = jax.block_until_ready(fused_enc_smooth_loss(ed, td, ones_d))
    r6 = jnp.mean((ed - td) ** 2) + jnp.mean(
        (ed[:, 1:] - ed[:, :-1] + 1.0) ** 2)
    assert jnp.allclose(g6, r6, rtol=1e-5, atol=1e-5), (g6, r6)

    # 5) fallback (B, S) layout with explicit tile + masked tail rows
    Bm = 20
    km1, km2 = jax.random.split(jax.random.PRNGKey(2), 2)
    pm = jax.random.normal(km1, (Bm, S), dtype=jnp.float32)
    tm = jax.random.normal(km2, (Bm, S), dtype=jnp.float32)
    g7 = jax.block_until_ready(weighted_mse_loss(pm, tm, w_ref, tile_rows=8))
    r7 = jnp.mean((pm - tm) ** 2 * w_ref)
    assert jnp.allclose(g7, r7, rtol=1e-5, atol=1e-5), (g7, r7)

    # 6) bf16 inputs: cast happens in-kernel (half the HBM read traffic)
    g8 = jax.block_until_ready(weighted_mse_loss(
        pd.astype(jnp.bfloat16), td.astype(jnp.bfloat16), wd))
    assert jnp.allclose(g8, r4, rtol=2e-2, atol=2e-2), (g8, r4)

    print("KERNEL_OK")
</pallas_src>

<mosaic_0001>
module attributes {stable_mosaic.version = 11 : i64} {
  func.func @kernel(%arg0: i32, %arg1: memref<4x8xf32, #tpu.memory_space<vmem>>, %arg2: memref<4x8xf32, #tpu.memory_space<vmem>>, %arg3: memref<1x8xf32, #tpu.memory_space<vmem>>, %arg4: memref<1x1x8xf32, #tpu.memory_space<vmem>>) attributes {dimension_semantics = [#tpu.dimension_semantics<parallel>], iteration_bounds = array<i64: 1>, scalar_prefetch = 0 : i64, scratch_operands = 0 : i64, tpu.core_type = #tpu.core_type<tc>, window_params = [{transform_indices = @transform_0, window_bounds = array<i64: 4, 8>}, {transform_indices = @transform_1, window_bounds = array<i64: 4, 8>}, {pipeline_mode = #tpu.pipeline_mode<synchronous>, transform_indices = @transform_2, window_bounds = array<i64: 1, 8>}, {transform_indices = @transform_3, window_bounds = array<i64: 1, 1, 8>}]} {
    %c0 = arith.constant 0 : index
    %c0_0 = arith.constant 0 : index
    %0 = vector.load %arg1[%c0, %c0_0] : memref<4x8xf32, #tpu.memory_space<vmem>>, vector<4x8xf32>
    %c0_1 = arith.constant 0 : index
    %c0_2 = arith.constant 0 : index
    %1 = vector.load %arg2[%c0_1, %c0_2] : memref<4x8xf32, #tpu.memory_space<vmem>>, vector<4x8xf32>
    %2 = arith.subf %0, %1 : vector<4x8xf32>
    %3 = arith.mulf %2, %2 : vector<4x8xf32>
    %c0_3 = arith.constant 0 : index
    %c0_4 = arith.constant 0 : index
    %4 = vector.load %arg3[%c0_3, %c0_4] : memref<1x8xf32, #tpu.memory_space<vmem>>, vector<1x8xf32>
    %5 = vector.broadcast %4 : vector<1x8xf32> to vector<4x8xf32>
    %6 = arith.mulf %3, %5 : vector<4x8xf32>
    %cst = arith.constant dense<0.000000e+00> : vector<8xf32>
    %7 = vector.multi_reduction <add>, %6, %cst [0] : vector<4x8xf32> to vector<8xf32>
    %c0_5 = arith.constant 0 : index
    %c0_6 = arith.constant 0 : index
    %c0_7 = arith.constant 0 : index
    %8 = vector.load %arg4[%c0_5, %c0_6, %c0_7] : memref<1x1x8xf32, #tpu.memory_space<vmem>>, vector<1x1x8xf32>
    %9 = vector.shape_cast %8 : vector<1x1x8xf32> to vector<8xf32>
    %10 = vector.shape_cast %7 : vector<8xf32> to vector<1x1x8xf32>
    tpu.vector_store %arg4[%c0_5, %c0_6, %c0_7], %10 {strides = array<i32>} : memref<1x1x8xf32, #tpu.memory_space<vmem>>, vector<1x1x8xf32>,
    return
  }
  func.func @transform_0(%arg0: i32) -> (i32, i32) {
    %c0_i32 = arith.constant 0 : i32
    %c0_i32_0 = arith.constant 0 : i32
    return %arg0, %c0_i32 : i32, i32
  }
  func.func @transform_1(%arg0: i32) -> (i32, i32) {
    %c0_i32 = arith.constant 0 : i32
    %c0_i32_0 = arith.constant 0 : i32
    return %arg0, %c0_i32 : i32, i32
  }
  func.func @transform_2(%arg0: i32) -> (i32, i32) {
    %c0_i32 = arith.constant 0 : i32
    %c0_i32_0 = arith.constant 0 : i32
    %c0_i32_1 = arith.constant 0 : i32
    return %c0_i32, %c0_i32_0 : i32, i32
  }
  func.func @transform_3(%arg0: i32) -> (i32, i32, i32) {
    %c0_i32 = arith.constant 0 : i32
    %c0_i32_0 = arith.constant 0 : i32
    %c0_i32_1 = arith.constant 0 : i32
    return %arg0, %c0_i32, %c0_i32_0 : i32, i32, i32
  }
}

</mosaic_0001>

<llo_original>
// kernel: tpu_custom_call.1
$region0: #{tpu_custom_call.1}
  #allocation0 [shape = 'u32[]', space=smem, size = 0x4, offset = 0x4, fixed_abs, tag = 'smem constant byte address 0x4 - core index']
  #allocation1 [shape = 'u32[144,128]{1,0:T(1,128)}', space=vmem, size = 0x12000, scoped, tag = 'internal scratch']
  %s0 = inlined_call_operand.hbm [shape: f32[4,8], index: 0, kind: input, shape index: {}]
  %s1 = inlined_call_operand.hbm [shape: f32[4,8], index: 1, kind: input, shape index: {}]
  %s2 = inlined_call_operand.vmem [shape: f32[1,8], index: 2, kind: input, shape index: {}]
  %s3 = inlined_call_operand.hbm [shape: f32[1,1,8], index: 3, kind: output, shape index: {}]
  %s4 = sld [smem:[#allocation0]]
  $region30: #{tpu_custom_call.1} parent=0
    _
  %s6 = ssub.s32 1, %s4
  %s7 = scalar_select 0, %s6, %s4
  $region1: #{tpu_custom_call.1} parent=0
    #allocation2 [shape = 'u8[2048]{0}', space=vmem, size = 0x800, scoped, tag = 'input window, operand 0, single buffered']
    #allocation3 [shape = 's32[1]{0}', space=sflag, size = 0x4, scoped, tag = 'scoped memory for tpu_custom_call.1']
    #allocation4 [shape = 's32[1]{0}', space=sflag, size = 0x4, scoped, tag = 'scoped memory for tpu_custom_call.1']
    #allocation5 [shape = 'u8[2048]{0}', space=vmem, size = 0x800, scoped, tag = 'input window, operand 1, single buffered']
    #allocation6 [shape = 's32[1]{0}', space=sflag, size = 0x4, scoped, tag = 'scoped memory for tpu_custom_call.1']
    #allocation7 [shape = 'u8[512]{0}', space=vmem, size = 0x400, scoped, tag = 'output window, operand 0, single buffered']
    %8 = vsyncpa [#allocation3], 0
    %9 = vsyncpa [#allocation6], 0
    %10 = vsyncpa [#allocation4], 0
    // Predicated region
    $region2: #{tpu_custom_call.1} parent=1 // pred_check
      _
    $region3: #{tpu_custom_call.1} parent=1 // pred_check_branch
      %12 = sbr.rel (0) target = $region5
    $region4: #{tpu_custom_call.1} parent=1 // pred_region
      %s14 = ssub.s32 64, 64
      %15 = vsyncadd [#allocation3], %s14
      %s17 = sshll.u32 [#allocation2], 4
      %s18 = int_to_ptr.vmem [resolvable:$true] %s17
      %20 = dma.hbm_to_vmem [thread:$0]  %s0, 64, %s18, [#allocation3]
    $region5: #{tpu_custom_call.1} parent=1 // pred_fallthru
      _
    // Predicated region
    $region6: #{tpu_custom_call.1} parent=1 // pred_check
      _
    $region7: #{tpu_custom_call.1} parent=1 // pred_check_branch
      %22 = sbr.rel (0) target = $region9
    $region8: #{tpu_custom_call.1} parent=1 // pred_region
      %s24 = ssub.s32 64, 64
      %25 = vsyncadd [#allocation6], %s24
      %s27 = sshll.u32 [#allocation5], 4
      %s28 = int_to_ptr.vmem [resolvable:$true] %s27
      %30 = dma.hbm_to_vmem [thread:$0]  %s1, 64, %s28, [#allocation6]
    $region9: #{tpu_custom_call.1} parent=1 // pred_fallthru
      _
    // Predicated region
    $region10: #{tpu_custom_call.1} parent=1 // pred_check
      _
    $region11: #{tpu_custom_call.1} parent=1 // pred_check_branch
      %32 = sbr.rel (0) target = $region13
    $region12: #{tpu_custom_call.1} parent=1 // pred_region
      _
    $region13: #{tpu_custom_call.1} parent=1 // pred_fallthru
      _
    // Predicated region
    $region14: #{tpu_custom_call.1} parent=1 // pred_check
      _
    $region15: #{tpu_custom_call.1} parent=1 // pred_check_branch
      %34 = sbr.rel (0) target = $region17
    $region16: #{tpu_custom_call.1} parent=1 // pred_region
      %35 = dma.done [#allocation3], 64
    $region17: #{tpu_custom_call.1} parent=1 // pred_fallthru
      _
    // Predicated region
    $region18: #{tpu_custom_call.1} parent=1 // pred_check
      _
    $region19: #{tpu_custom_call.1} parent=1 // pred_check_branch
      %37 = sbr.rel (0) target = $region21
    $region20: #{tpu_custom_call.1} parent=1 // pred_region
      %38 = dma.done [#allocation6], 64
    $region21: #{tpu_custom_call.1} parent=1 // pred_fallthru
      _
    %v39 = vld [vmem:[#allocation2] sm:$0xf]
    %v40 = vld [vmem:[#allocation5] sm:$0xf]
    %v41 = vsub.f32 %v39, %v40
    %v42 = vmul.f32 %v41, %v41
    %v43 = vld [vmem:[%s2] sm:$0x1]
    %v45 = vlaneseq
    %v46 = vshrl.u32 %v45, 7
    %v47 = vsub.s32 0, %v46
    %v48 = vrot.slane %v43, %v47
    %v50 = vmul.f32 %v42, %v48
    %vm51 = vcmask 60416
    %v52 = vsel %vm51, %v50, 0.0
    %v53 = vrot.slane %v52, 4
    %v54 = vadd.f32 %v52, %v53
    %v55 = vrot.slane %v54, 2
    %v56 = vadd.f32 %v54, %v55
    %v57 = vrot.slane %v56, 1
    %v58 = vadd.f32 %v56, %v57
    %vm59 = vcmask 57344
    %60 = vst.msk [vmem:[#allocation7] sm:$0x1] %vm59, %v58
    // Predicated region
    $region22: #{tpu_custom_call.1} parent=1 // pred_check
      _
    $region23: #{tpu_custom_call.1} parent=1 // pred_check_branch
      %62 = sbr.rel (0) target = $region25
    $region24: #{tpu_custom_call.1} parent=1 // pred_region
      %s64 = ssub.s32 16, 16
      %65 = vsyncadd [#allocation4], %s64
      %s67 = sshll.u32 [#allocation7], 4
      %s68 = int_to_ptr.vmem [resolvable:$true] %s67
      %70 = dma.vmem_to_hbm [thread:$0]  %s68, 16, %s3, [#allocation4]
    $region25: #{tpu_custom_call.1} parent=1 // pred_fallthru
      _
    // Predicated region
    $region26: #{tpu_custom_call.1} parent=1 // pred_check
      _
    $region27: #{tpu_custom_call.1} parent=1 // pred_check_branch
      %72 = sbr.rel (0) target = $region29
    $region28: #{tpu_custom_call.1} parent=1 // pred_region
      %73 = dma.done [#allocation4], 16
    $region29: #{tpu_custom_call.1} parent=1 // pred_fallthru
      _
    %74 = vsyncpa [#allocation3], 1
    %75 = vsyncpa [#allocation6], 1
    %76 = vsyncpa [#allocation4], 1

</llo_original>
